<compile_context>
chip_gen: v7x
topology: tpu7x:2x2x1
jax: 0.10.0
libtpu: 0.0.40
codegen_flags: <defaults>
</compile_context>

<pallas_src>
import math

import jax
import jax.numpy as jnp
from jax.experimental import pallas as pl
from jax.experimental.pallas import tpu as pltpu

L_FREQ = 8                      # frequency octaves in the positional encoding
IN_DIM = 3
ENC_HALF = L_FREQ * IN_DIM      # 24  (sin block == cos block)
ENC_DIM = 2 * ENC_HALF          # 48
ROWS_PER_DIM = 2 * L_FREQ       # 16 rows per input dim: sin oct 0..7, then cos oct 0..7
HIDDEN = 64
OUT_DIM = 1
TN_MAX = 4096                   # max batch (lane) tile per grid step


def _radar_occ_nerf_kernel(pts_ref, a_ref, b_ref, w1k_ref, w2t_ref, w3t_ref, out_ref):
    # pts: (3, TN) f32   a, b: (48, 1) f32   w1k: (64, 48) f32
    # w2t: (64, 64) f32  w3t: (8, 64) f32 (rows 1..7 zero)   out: (1, TN) f32
    x = pts_ref[...]                                  # keep f32: bf16 loses octave-7 phase
    tn = x.shape[1]

    # Dim-major slab: 16 aligned rows per input dim (sublane broadcasts + 8-aligned concat;
    # no XLU relayout, full vreg occupancy downstream).
    x48 = jnp.concatenate(
        [jnp.broadcast_to(x[d:d + 1, :], (ROWS_PER_DIM, tn)) for d in range(IN_DIM)],
        axis=0)                                       # (48, TN)

    # angle = 2^i*pi*(x+1)/2 (+ pi/2 on the cos rows), folded into one x*a + b pass;
    # cos(t) = sin(t + pi/2), so ONE jnp.sin covers the whole encoding slab.
    enc = jnp.sin(x48 * a_ref[...] + b_ref[...])      # (48, TN) f32
    # TODO(synk): if profiling confirms this sin is the binding VALU cost, derive octaves
    #             1..7 from octave 0 with double-angle recurrences (8x fewer transcendentals).

    # Layer 1: single K=48 matmul against the permuted W1^T.
    h = jnp.dot(w1k_ref[...], enc, preferred_element_type=jnp.float32)   # (64, TN)
    h = jnp.maximum(h, 0.0)

    # Layer 2.
    h = jnp.dot(w2t_ref[...], h, preferred_element_type=jnp.float32)     # (64, TN)
    h = jnp.maximum(h, 0.0)

    # Layer 3 (64 -> 1) on the MXU; w3t is zero-padded to 8 rows, keep row 0 (lane-dense).
    o = jnp.dot(w3t_ref[...], h, preferred_element_type=jnp.float32)     # (8, TN)
    out_ref[...] = o[0:1, :]


def _round_up(x, m):
    return ((x + m - 1) // m) * m


def _prep_weights(w1, w2, w3):
    """Permute / transpose the reference weights for the kernel's dim-major encoding layout."""
    rows = jnp.arange(ENC_DIM)
    d = rows // ROWS_PER_DIM                      # input dim of each kernel encoding row
    j = rows % ROWS_PER_DIM
    i = jnp.where(j < L_FREQ, j, j - L_FREQ)      # octave
    is_cos = j >= L_FREQ
    # Reference encoding column order: [sin (octave-major, dim-minor); cos (...)].
    oc = jnp.where(is_cos, ENC_HALF, 0) + i * IN_DIM + d
    w1k = jnp.transpose(w1[oc, :]).astype(jnp.float32)                   # (64, 48)
    w2t = jnp.transpose(w2).astype(jnp.float32)                          # (64, 64)
    w3t = jnp.zeros((8, HIDDEN), jnp.float32).at[0, :].set(w3[:, 0])     # (8, 64) MXU-friendly
    freq = jnp.float32(math.pi) * (2.0 ** i.astype(jnp.float32))
    a_col = (0.5 * freq)[:, None]                                        # folds the (x+1)/2 shift
    b_col = (0.5 * freq + jnp.where(is_cos, 0.5 * math.pi, 0.0))[:, None]
    return a_col, b_col, w1k, w2t, w3t


@jax.jit
def radar_occ_nerf_forward(pts, w1, w2, w3):
    """pts: [N, 3] float32 in [-1, 1]  ->  sigma logits [N, 1] float32."""
    n = pts.shape[0]
    # >= 2 (even) grid steps so both v7x TensorCores work; tile chosen to minimize padding.
    nblk = max(2, -(-max(n, 1) // TN_MAX))
    nblk += nblk % 2
    tn = _round_up(-(-max(n, 1) // nblk), 128)
    n_pad = tn * nblk

    # Batch-on-lanes layout: (3, N), padded up to a multiple of the lane tile.
    # TODO(synk): if the producer can emit (3, N) directly, drop this transpose/pad pass.
    pts_t = jnp.transpose(pts)
    if n_pad != n:
        pts_t = jnp.pad(pts_t, ((0, 0), (0, n_pad - n)))

    a_col, b_col, w1k, w2t, w3t = _prep_weights(w1, w2, w3)

    flops = 2 * n_pad * (ENC_DIM * HIDDEN + HIDDEN * HIDDEN + HIDDEN * OUT_DIM)
    out = pl.pallas_call(
        _radar_occ_nerf_kernel,
        out_shape=jax.ShapeDtypeStruct((OUT_DIM, n_pad), jnp.float32),
        grid_spec=pltpu.PrefetchScalarGridSpec(
            num_scalar_prefetch=0,
            grid=(nblk,),
            in_specs=[
                pl.BlockSpec((IN_DIM, tn), lambda i: (0, i)),        # point tile
                pl.BlockSpec(memory_space=pltpu.MemorySpace.VMEM),   # a column (resident)
                pl.BlockSpec(memory_space=pltpu.MemorySpace.VMEM),   # b column (resident)
                pl.BlockSpec(memory_space=pltpu.MemorySpace.VMEM),   # W1^T permuted (resident)
                pl.BlockSpec(memory_space=pltpu.MemorySpace.VMEM),   # W2^T (resident)
                pl.BlockSpec(memory_space=pltpu.MemorySpace.VMEM),   # W3 padded (resident)
            ],
            out_specs=pl.BlockSpec((OUT_DIM, tn), lambda i: (0, i)),
        ),
        compiler_params=pltpu.CompilerParams(
            dimension_semantics=("parallel",)),
        cost_estimate=pl.CostEstimate(
            flops=flops,
            transcendentals=ENC_DIM * n_pad,
            bytes_accessed=n_pad * (IN_DIM + OUT_DIM) * 4 + 32 * 1024),
    )(pts_t, a_col, b_col, w1k, w2t, w3t)

    return jnp.transpose(out[:, :n])                      # (N, 1)


def init_params(key):
    k1, k2, k3 = jax.random.split(key, 3)
    # Deterministic synthetic weights (tcnn FullyFusedMLP has no biases).
    w1 = jax.random.normal(k1, (ENC_DIM, HIDDEN), jnp.float32) * (1.0 / math.sqrt(ENC_DIM))
    w2 = jax.random.normal(k2, (HIDDEN, HIDDEN), jnp.float32) * (1.0 / math.sqrt(HIDDEN))
    w3 = jax.random.normal(k3, (HIDDEN, OUT_DIM), jnp.float32) * (1.0 / math.sqrt(HIDDEN))
    return w1, w2, w3


def _encode(pts):
    """(N, 3) -> (N, 48): octave-major, dim-minor; sin block then cos block."""
    x = (pts + 1.0) * 0.5
    freqs = jnp.float32(math.pi) * (2.0 ** jnp.arange(L_FREQ, dtype=jnp.float32))
    ang = (x[:, None, :] * freqs[None, :, None]).reshape(-1, ENC_HALF)
    return jnp.concatenate([jnp.sin(ang), jnp.cos(ang)], axis=-1)


def _reference_forward(pts, w1, w2, w3):
    """Plain-JAX full-f32 reference."""
    hi = jax.lax.Precision.HIGHEST
    e = _encode(pts)
    h = jnp.maximum(jnp.dot(e, w1, precision=hi), 0.0)
    h = jnp.maximum(jnp.dot(h, w2, precision=hi), 0.0)
    return jnp.dot(h, w3, precision=hi)


if __name__ == "__main__":
    key = jax.random.PRNGKey(0)
    kp, kw = jax.random.split(key)
    w1, w2, w3 = init_params(kw)

    # Small (two 128-lane tiles) and multi-tile grids.
    for n in (200, 5000):
        pts = jax.random.uniform(jax.random.fold_in(kp, n), (n, IN_DIM),
                                 jnp.float32, minval=-1.0, maxval=1.0)
        sigma = jax.block_until_ready(radar_occ_nerf_forward(pts, w1, w2, w3))
        assert sigma.shape == (n, OUT_DIM), sigma.shape

        ref = _reference_forward(pts, w1, w2, w3)
        err = float(jnp.max(jnp.abs(sigma - ref)))
        assert jnp.allclose(sigma, ref, atol=5e-2, rtol=5e-2), err

    print("KERNEL_OK")
</pallas_src>

<mosaic_0001>
module attributes {stable_mosaic.version = 11 : i64} {
  func.func @_radar_occ_nerf_kernel(%arg0: i32, %arg1: memref<3x128xf32, #tpu.memory_space<vmem>>, %arg2: memref<48x1xf32, #tpu.memory_space<vmem>>, %arg3: memref<48x1xf32, #tpu.memory_space<vmem>>, %arg4: memref<64x48xf32, #tpu.memory_space<vmem>>, %arg5: memref<64x64xf32, #tpu.memory_space<vmem>>, %arg6: memref<8x64xf32, #tpu.memory_space<vmem>>, %arg7: memref<1x128xf32, #tpu.memory_space<vmem>>) attributes {dimension_semantics = [#tpu.dimension_semantics<parallel>], iteration_bounds = array<i64: 2>, scalar_prefetch = 0 : i64, scratch_operands = 0 : i64, tpu.core_type = #tpu.core_type<tc>, window_params = [{transform_indices = @transform_0, window_bounds = array<i64: 3, 128>}, {pipeline_mode = #tpu.pipeline_mode<synchronous>, transform_indices = @transform_1, window_bounds = array<i64: 48, 1>}, {pipeline_mode = #tpu.pipeline_mode<synchronous>, transform_indices = @transform_2, window_bounds = array<i64: 48, 1>}, {pipeline_mode = #tpu.pipeline_mode<synchronous>, transform_indices = @transform_3, window_bounds = array<i64: 64, 48>}, {pipeline_mode = #tpu.pipeline_mode<synchronous>, transform_indices = @transform_4, window_bounds = array<i64: 64, 64>}, {pipeline_mode = #tpu.pipeline_mode<synchronous>, transform_indices = @transform_5, window_bounds = array<i64: 8, 64>}, {transform_indices = @transform_6, window_bounds = array<i64: 1, 128>}]} {
    %c0 = arith.constant 0 : index
    %c0_0 = arith.constant 0 : index
    %0 = vector.load %arg1[%c0, %c0_0] : memref<3x128xf32, #tpu.memory_space<vmem>>, vector<3x128xf32>
    %1 = vector.extract_strided_slice %0 {offsets = [0, 0], sizes = [1, 128], strides = [1, 1]} : vector<3x128xf32> to vector<1x128xf32>
    %2 = vector.shape_cast %1 : vector<1x128xf32> to vector<1x128xf32>
    %3 = vector.broadcast %2 : vector<1x128xf32> to vector<16x128xf32>
    %4 = vector.extract_strided_slice %0 {offsets = [1, 0], sizes = [1, 128], strides = [1, 1]} : vector<3x128xf32> to vector<1x128xf32>
    %5 = vector.shape_cast %4 : vector<1x128xf32> to vector<1x128xf32>
    %6 = vector.broadcast %5 : vector<1x128xf32> to vector<16x128xf32>
    %7 = vector.extract_strided_slice %0 {offsets = [2, 0], sizes = [1, 128], strides = [1, 1]} : vector<3x128xf32> to vector<1x128xf32>
    %8 = vector.shape_cast %7 : vector<1x128xf32> to vector<1x128xf32>
    %9 = vector.broadcast %8 : vector<1x128xf32> to vector<16x128xf32>
    %10 = tpu.concatenate %3, %6, %9 in 0 : vector<16x128xf32>, vector<16x128xf32>, vector<16x128xf32> -> vector<48x128xf32>
    %c0_1 = arith.constant 0 : index
    %c0_2 = arith.constant 0 : index
    %11 = vector.load %arg2[%c0_1, %c0_2] : memref<48x1xf32, #tpu.memory_space<vmem>>, vector<48x1xf32>
    %12 = vector.broadcast %11 : vector<48x1xf32> to vector<48x128xf32>
    %13 = arith.mulf %10, %12 : vector<48x128xf32>
    %c0_3 = arith.constant 0 : index
    %c0_4 = arith.constant 0 : index
    %14 = vector.load %arg3[%c0_3, %c0_4] : memref<48x1xf32, #tpu.memory_space<vmem>>, vector<48x1xf32>
    %15 = vector.broadcast %14 : vector<48x1xf32> to vector<48x128xf32>
    %16 = arith.addf %13, %15 : vector<48x128xf32>
    %17 = math.sin %16 : vector<48x128xf32>
    %c0_5 = arith.constant 0 : index
    %c0_6 = arith.constant 0 : index
    %18 = vector.load %arg4[%c0_5, %c0_6] : memref<64x48xf32, #tpu.memory_space<vmem>>, vector<64x48xf32>
    %cst = arith.constant dense<0.000000e+00> : vector<64x128xf32>
    %19 = tpu.matmul %18, %17, %cst {dimension_numbers = #tpu.dot_dimension_numbers<[1], [0], [0], [1], [0, 0, 1, 1], [], []>} : vector<64x48xf32>, vector<48x128xf32>, vector<64x128xf32> -> vector<64x128xf32>
    %cst_7 = arith.constant 0.000000e+00 : f32
    %20 = vector.broadcast %cst_7 : f32 to vector<64x128xf32>
    %21 = arith.maximumf %19, %20 : vector<64x128xf32>
    %c0_8 = arith.constant 0 : index
    %c0_9 = arith.constant 0 : index
    %22 = vector.load %arg5[%c0_8, %c0_9] : memref<64x64xf32, #tpu.memory_space<vmem>>, vector<64x64xf32>
    %cst_10 = arith.constant dense<0.000000e+00> : vector<64x128xf32>
    %23 = tpu.matmul %22, %21, %cst_10 {dimension_numbers = #tpu.dot_dimension_numbers<[1], [0], [0], [1], [0, 0, 1, 1], [], []>} : vector<64x64xf32>, vector<64x128xf32>, vector<64x128xf32> -> vector<64x128xf32>
    %cst_11 = arith.constant 0.000000e+00 : f32
    %24 = vector.broadcast %cst_11 : f32 to vector<64x128xf32>
    %25 = arith.maximumf %23, %24 : vector<64x128xf32>
    %c0_12 = arith.constant 0 : index
    %c0_13 = arith.constant 0 : index
    %26 = vector.load %arg6[%c0_12, %c0_13] : memref<8x64xf32, #tpu.memory_space<vmem>>, vector<8x64xf32>
    %cst_14 = arith.constant dense<0.000000e+00> : vector<8x128xf32>
    %27 = tpu.matmul %26, %25, %cst_14 {dimension_numbers = #tpu.dot_dimension_numbers<[1], [0], [0], [1], [0, 0, 1, 1], [], []>} : vector<8x64xf32>, vector<64x128xf32>, vector<8x128xf32> -> vector<8x128xf32>
    %28 = vector.extract_strided_slice %27 {offsets = [0, 0], sizes = [1, 128], strides = [1, 1]} : vector<8x128xf32> to vector<1x128xf32>
    %c0_15 = arith.constant 0 : index
    %c0_16 = arith.constant 0 : index
    %29 = vector.load %arg7[%c0_15, %c0_16] : memref<1x128xf32, #tpu.memory_space<vmem>>, vector<1x128xf32>
    tpu.vector_store %arg7[%c0_15, %c0_16], %28 {strides = array<i32>} : memref<1x128xf32, #tpu.memory_space<vmem>>, vector<1x128xf32>,
    return
  }
  func.func @transform_0(%arg0: i32) -> (i32, i32) {
    %c0_i32 = arith.constant 0 : i32
    %c0_i32_0 = arith.constant 0 : i32
    return %c0_i32, %arg0 : i32, i32
  }
  func.func @transform_1(%arg0: i32) -> (i32, i32) {
    %c0_i32 = arith.constant 0 : i32
    %c0_i32_0 = arith.constant 0 : i32
    %c0_i32_1 = arith.constant 0 : i32
    return %c0_i32, %c0_i32_0 : i32, i32
  }
  func.func @transform_2(%arg0: i32) -> (i32, i32) {
    %c0_i32 = arith.constant 0 : i32
    %c0_i32_0 = arith.constant 0 : i32
    %c0_i32_1 = arith.constant 0 : i32
    return %c0_i32, %c0_i32_0 : i32, i32
  }
  func.func @transform_3(%arg0: i32) -> (i32, i32) {
    %c0_i32 = arith.constant 0 : i32
    %c0_i32_0 = arith.constant 0 : i32
    %c0_i32_1 = arith.constant 0 : i32
    return %c0_i32, %c0_i32_0 : i32, i32
  }
  func.func @transform_4(%arg0: i32) -> (i32, i32) {
    %c0_i32 = arith.constant 0 : i32
    %c0_i32_0 = arith.constant 0 : i32
    %c0_i32_1 = arith.constant 0 : i32
    return %c0_i32, %c0_i32_0 : i32, i32
  }
  func.func @transform_5(%arg0: i32) -> (i32, i32) {
    %c0_i32 = arith.constant 0 : i32
    %c0_i32_0 = arith.constant 0 : i32
    %c0_i32_1 = arith.constant 0 : i32
    return %c0_i32, %c0_i32_0 : i32, i32
  }
  func.func @transform_6(%arg0: i32) -> (i32, i32) {
    %c0_i32 = arith.constant 0 : i32
    %c0_i32_0 = arith.constant 0 : i32
    return %c0_i32, %arg0 : i32, i32
  }
}

</mosaic_0001>

<llo_original>
// kernel: radar_occ_nerf_forward.1
$region0: #{radar_occ_nerf_forward.1}
  #allocation0 [shape = 'u32[]', space=smem, size = 0x4, offset = 0x4, fixed_abs, tag = 'smem constant byte address 0x4 - core index']
  #allocation1 [shape = 'u32[144,128]{1,0:T(1,128)}', space=vmem, size = 0x12000, scoped, tag = 'internal scratch']
  %s0 = inlined_call_operand.vmem [shape: f32[3,256], index: 0, kind: input, shape index: {}]
  %s1 = inlined_call_operand.vmem [shape: f32[48,1], index: 1, kind: input, shape index: {}]
  %s2 = inlined_call_operand.vmem [shape: f32[48,1], index: 2, kind: input, shape index: {}]
  %s3 = inlined_call_operand.vmem [shape: f32[64,48], index: 3, kind: input, shape index: {}]
  %s4 = inlined_call_operand.vmem [shape: f32[64,64], index: 4, kind: input, shape index: {}]
  %s5 = inlined_call_operand.vmem [shape: f32[8,64], index: 5, kind: input, shape index: {}]
  %s6 = inlined_call_operand.vmem [shape: f32[1,256], index: 6, kind: output, shape index: {}]
  %s7 = sld [smem:[#allocation0]]
  $region57: #{radar_occ_nerf_forward.1} parent=0
    _
  %s9 = ssub.s32 1, %s7
  %s10 = scalar_select 0, %s9, %s7
  loop: start=0, step=1, limit=4
  $region2: #{radar_occ_nerf_forward.1} parent=0 // loop_pre_header
    _
  $region3: #{radar_occ_nerf_forward.1} parent=0 // loop_header
    %s12 = sphi 0, %s16
    %p13 = scmp.ge.s32.totalorder %s12, 4
    %s22 = sphi 0, %s24
    %s25 = sphi 0, %s22
    %s26 = sphi 0, %s25
    %s42 = sphi 0, %s26
    %s46 = sphi 0, %s46
    %s48 = sphi 0, %s46
    %s49 = sphi 0, %s48
    %s63 = sphi 0, %s49
    %s67 = sphi 0, %s67
    %s69 = sphi 0, %s67
    %s70 = sphi 0, %s69
    %s84 = sphi 0, %s70
    %s88 = sphi 0, %s88
    %s90 = sphi 0, %s88
    %s91 = sphi 0, %s90
    %s105 = sphi 0, %s91
    %s109 = sphi 0, %s109
    %s111 = sphi 0, %s109
    %s112 = sphi 0, %s111
    %s126 = sphi 0, %s112
    %s130 = sphi 0, %s130
    %s132 = sphi 0, %s130
    %s133 = sphi 0, %s132
    %s147 = sphi 0, %s133
    %s153 = sphi 0, %s155
    %s156 = sphi 0, %s153
    %s157 = sphi 0, %s156
    %s173 = sphi 0, %s157
  $region4: #{radar_occ_nerf_forward.1} parent=0 // loop_header_branch
    %15 = sbr.rel (%p13) target = $region8
  $region5: #{radar_occ_nerf_forward.1} parent=0 // loop_body
    %s17 = ssub.s32 %s12, 1
    %s18 = ssub.s32 %s12, 2
    %s19 = sadd.s32 %s12, 1
    %s20 = ssub.s32 %s12, %s19
    %p21 = scmp.eq.s32.totalorder %s20, 0
    %s23 = sadd.s32 %s22, 1
    %s24 = scalar_select %p21, %s22, %s23
    %p27 = pneg %p21
    %p28 = scmp.eq.s32.totalorder %s12, 1
    %p29 = por %p27, %p28
    %p30 = scmp.ne.s32.totalorder %s22, %s25
    %p31 = scmp.eq.s32.totalorder %s12, 0
    %p32 = por %p30, %p31
    %p33 = scmp.ne.s32.totalorder %s22, %s25
    %p34 = scmp.eq.s32.totalorder %s17, 1
    %p35 = por %p33, %p34
    %p36 = scmp.ne.s32.totalorder %s25, %s26
    %p37 = scmp.eq.s32.totalorder %s17, 0
    %p38 = por %p36, %p37
    %p39 = scmp.ne.s32.totalorder %s25, %s26
    %p40 = scmp.eq.s32.totalorder %s18, 1
    %p41 = por %p39, %p40
    %p43 = scmp.ne.s32.totalorder %s26, %s42
    %p44 = scmp.eq.s32.totalorder %s18, 0
    %p45 = por %p43, %p44
    %s47 = sadd.s32 %s46, 1
    %p50 = scmp.eq.s32.totalorder %s12, 1
    %p51 = scmp.ne.s32.totalorder %s46, %s48
    %p52 = scmp.eq.s32.totalorder %s12, 0
    %p53 = por %p51, %p52
    %p54 = scmp.ne.s32.totalorder %s46, %s48
    %p55 = scmp.eq.s32.totalorder %s17, 1
    %p56 = por %p54, %p55
    %p57 = scmp.ne.s32.totalorder %s48, %s49
    %p58 = scmp.eq.s32.totalorder %s17, 0
    %p59 = por %p57, %p58
    %p60 = scmp.ne.s32.totalorder %s48, %s49
    %p61 = scmp.eq.s32.totalorder %s18, 1
    %p62 = por %p60, %p61
    %p64 = scmp.ne.s32.totalorder %s49, %s63
    %p65 = scmp.eq.s32.totalorder %s18, 0
    %p66 = por %p64, %p65
    %s68 = sadd.s32 %s67, 1
    %p71 = scmp.eq.s32.totalorder %s12, 1
    %p72 = scmp.ne.s32.totalorder %s67, %s69
    %p73 = scmp.eq.s32.totalorder %s12, 0
    %p74 = por %p72, %p73
    %p75 = scmp.ne.s32.totalorder %s67, %s69
    %p76 = scmp.eq.s32.totalorder %s17, 1
    %p77 = por %p75, %p76
    %p78 = scmp.ne.s32.totalorder %s69, %s70
    %p79 = scmp.eq.s32.totalorder %s17, 0
    %p80 = por %p78, %p79
    %p81 = scmp.ne.s32.totalorder %s69, %s70
    %p82 = scmp.eq.s32.totalorder %s18, 1
    %p83 = por %p81, %p82
    %p85 = scmp.ne.s32.totalorder %s70, %s84
    %p86 = scmp.eq.s32.totalorder %s18, 0
    %p87 = por %p85, %p86
    %s89 = sadd.s32 %s88, 1
    %p92 = scmp.eq.s32.totalorder %s12, 1
    %p93 = scmp.ne.s32.totalorder %s88, %s90
    %p94 = scmp.eq.s32.totalorder %s12, 0
    %p95 = por %p93, %p94
    %p96 = scmp.ne.s32.totalorder %s88, %s90
    %p97 = scmp.eq.s32.totalorder %s17, 1
    %p98 = por %p96, %p97
    %p99 = scmp.ne.s32.totalorder %s90, %s91
    %p100 = scmp.eq.s32.totalorder %s17, 0
    %p101 = por %p99, %p100
    %p102 = scmp.ne.s32.totalorder %s90, %s91
    %p103 = scmp.eq.s32.totalorder %s18, 1
    %p104 = por %p102, %p103
    %p106 = scmp.ne.s32.totalorder %s91, %s105
    %p107 = scmp.eq.s32.totalorder %s18, 0
    %p108 = por %p106, %p107
    %s110 = sadd.s32 %s109, 1
    %p113 = scmp.eq.s32.totalorder %s12, 1
    %p114 = scmp.ne.s32.totalorder %s109, %s111
    %p115 = scmp.eq.s32.totalorder %s12, 0
    %p116 = por %p114, %p115
    %p117 = scmp.ne.s32.totalorder %s109, %s111
    %p118 = scmp.eq.s32.totalorder %s17, 1
    %p119 = por %p117, %p118
    %p120 = scmp.ne.s32.totalorder %s111, %s112
    %p121 = scmp.eq.s32.totalorder %s17, 0
    %p122 = por %p120, %p121
    %p123 = scmp.ne.s32.totalorder %s111, %s112
    %p124 = scmp.eq.s32.totalorder %s18, 1
    %p125 = por %p123, %p124
    %p127 = scmp.ne.s32.totalorder %s112, %s126
    %p128 = scmp.eq.s32.totalorder %s18, 0
    %p129 = por %p127, %p128
    %s131 = sadd.s32 %s130, 1
    %p134 = scmp.eq.s32.totalorder %s12, 1
    %p135 = scmp.ne.s32.totalorder %s130, %s132
    %p136 = scmp.eq.s32.totalorder %s12, 0
    %p137 = por %p135, %p136
    %p138 = scmp.ne.s32.totalorder %s130, %s132
    %p139 = scmp.eq.s32.totalorder %s17, 1
    %p140 = por %p138, %p139
    %p141 = scmp.ne.s32.totalorder %s132, %s133
    %p142 = scmp.eq.s32.totalorder %s17, 0
    %p143 = por %p141, %p142
    %p144 = scmp.ne.s32.totalorder %s132, %s133
    %p145 = scmp.eq.s32.totalorder %s18, 1
    %p146 = por %p144, %p145
    %p148 = scmp.ne.s32.totalorder %s133, %s147
    %p149 = scmp.eq.s32.totalorder %s18, 0
    %p150 = por %p148, %p149
    %s151 = ssub.s32 %s12, %s19
    %p152 = scmp.eq.s32.totalorder %s151, 0
    %s154 = sadd.s32 %s153, 1
    %s155 = scalar_select %p152, %s153, %s154
    %p158 = pneg %p152
    %p159 = scmp.eq.s32.totalorder %s12, 1
    %p160 = por %p158, %p159
    %p161 = scmp.ne.s32.totalorder %s153, %s156
    %p162 = scmp.eq.s32.totalorder %s12, 0
    %p163 = por %p161, %p162
    %p164 = scmp.ne.s32.totalorder %s153, %s156
    %p165 = scmp.eq.s32.totalorder %s17, 1
    %p166 = por %p164, %p165
    %p167 = scmp.ne.s32.totalorder %s156, %s157
    %p168 = scmp.eq.s32.totalorder %s17, 0
    %p169 = por %p167, %p168
    %p170 = scmp.ne.s32.totalorder %s156, %s157
    %p171 = scmp.eq.s32.totalorder %s18, 1
    %p172 = por %p170, %p171
    %p174 = scmp.ne.s32.totalorder %s157, %s173
    %p175 = scmp.eq.s32.totalorder %s18, 0
    %p176 = por %p174, %p175
    %p177 = scmp.le.s32.totalorder 1, %s12
    %p178 = scmp.lt.s32.totalorder %s12, 3
    %p179 = pnand %p177, %p178
    %p180 = pneg %p179
    // Predicated region
    $region9: #{radar_occ_nerf_forward.1} parent=5 // pred_check
      _
    $region10: #{radar_occ_nerf_forward.1} parent=5 // pred_check_branch
      %182 = sbr.rel (%p179) target = $region12
    $region11: #{radar_occ_nerf_forward.1} parent=5 // pred_region
      %s183 = ssub.s32 %s12, 1
      // Predicated region
      $region13: #{radar_occ_nerf_forward.1} parent=11 // pred_check
        %p184 = pneg %p59
      $region14: #{radar_occ_nerf_forward.1} parent=11 // pred_check_branch
        %186 = sbr.rel (%p184) target = $region16
      $region15: #{radar_occ_nerf_forward.1} parent=11 // pred_region
        _
      $region16: #{radar_occ_nerf_forward.1} parent=11 // pred_fallthru
        _
      // Predicated region
      $region17: #{radar_occ_nerf_forward.1} parent=11 // pred_check
        %p187 = pneg %p80
      $region18: #{radar_occ_nerf_forward.1} parent=11 // pred_check_branch
        %189 = sbr.rel (%p187) target = $region20
      $region19: #{radar_occ_nerf_forward.1} parent=11 // pred_region
        _
      $region20: #{radar_occ_nerf_forward.1} parent=11 // pred_fallthru
        _
      // Predicated region
      $region21: #{radar_occ_nerf_forward.1} parent=11 // pred_check
        %p190 = pneg %p101
      $region22: #{radar_occ_nerf_forward.1} parent=11 // pred_check_branch
        %192 = sbr.rel (%p190) target = $region24
      $region23: #{radar_occ_nerf_forward.1} parent=11 // pred_region
        _
      $region24: #{radar_occ_nerf_forward.1} parent=11 // pred_fallthru
        _
      // Predicated region
      $region25: #{radar_occ_nerf_forward.1} parent=11 // pred_check
        %p193 = pneg %p122
      $region26: #{radar_occ_nerf_forward.1} parent=11 // pred_check_branch
        %195 = sbr.rel (%p193) target = $region28
      $region27: #{radar_occ_nerf_forward.1} parent=11 // pred_region
        _
      $region28: #{radar_occ_nerf_forward.1} parent=11 // pred_fallthru
        _
      // Predicated region
      $region29: #{radar_occ_nerf_forward.1} parent=11 // pred_check
        %p196 = pneg %p143
      $region30: #{radar_occ_nerf_forward.1} parent=11 // pred_check_branch
        %198 = sbr.rel (%p196) target = $region32
      $region31: #{radar_occ_nerf_forward.1} parent=11 // pred_region
        _
      $region32: #{radar_occ_nerf_forward.1} parent=11 // pred_fallthru
        _
    $region12: #{radar_occ_nerf_forward.1} parent=5 // pred_fallthru
      _
    %p199 = scmp.lt.s32.totalorder %s12, 2
    // Predicated region
    $region33: #{radar_occ_nerf_forward.1} parent=5 // pred_check
      %p200 = pneg %p199
    $region34: #{radar_occ_nerf_forward.1} parent=5 // pred_check_branch
      %202 = sbr.rel (%p200) target = $region36
    $region35: #{radar_occ_nerf_forward.1} parent=5 // pred_region
      // Predicated region
      $region37: #{radar_occ_nerf_forward.1} parent=35 // pred_check
        %p203 = pneg %p32
      $region38: #{radar_occ_nerf_forward.1} parent=35 // pred_check_branch
        %205 = sbr.rel (%p203) target = $region40
      $region39: #{radar_occ_nerf_forward.1} parent=35 // pred_region
        %p206 = scmp.lt.s32.totalorder %s12, 1
        %s207 = scalar_select %p206, %s12, 1
        %s208 = smul.addr %s207, 4
        %s209 = scalar_lea.vmem %s0, %s208
      $region40: #{radar_occ_nerf_forward.1} parent=35 // pred_fallthru
        _
    $region36: #{radar_occ_nerf_forward.1} parent=5 // pred_fallthru
      _
    %p210 = scmp.le.s32.totalorder 1, %s12
    %p211 = scmp.lt.s32.totalorder %s12, 3
    %p212 = pnand %p210, %p211
    %p213 = pneg %p212
    // Predicated region
    $region41: #{radar_occ_nerf_forward.1} parent=5 // pred_check
      _
    $region42: #{radar_occ_nerf_forward.1} parent=5 // pred_check_branch
      %215 = sbr.rel (%p212) target = $region44
    $region43: #{radar_occ_nerf_forward.1} parent=5 // pred_region
      %s216 = ssub.s32 %s12, 1
      %p217 = scmp.lt.s32.totalorder %s17, 1
      %s218 = scalar_select %p217, %s17, 1
      %s219 = smul.addr %s218, 4
      %s220 = scalar_lea.vmem %s0, %s219
      %p221 = pneg %p38
      %p222 = pneg %p35
      %p223 = pneg %p59
      %p224 = pneg %p56
      %p225 = pneg %p80
      %p226 = pneg %p77
      %p227 = pneg %p101
      %p228 = pneg %p98
      %p229 = pneg %p122
      %p230 = pneg %p119
      %p231 = pneg %p143
      %p232 = pneg %p140
      %p233 = pneg %p169
      %p234 = pneg %p166
      %p235 = scmp.lt.s32.totalorder %s17, 1
      %s236 = scalar_select %p235, %s17, 1
      %s237 = scalar_lea.vmem %s6, %s236
      %p238 = scmp.lt.s32.totalorder %s17, 1
      %s239 = scalar_select %p238, %s17, 1
      %s240 = smul.addr %s239, 4
      %s241 = scalar_lea.vmem %s0, %s240
      %p242 = scmp.lt.s32.totalorder %s17, 1
      %s243 = scalar_select %p242, %s17, 1
      %s244 = scalar_lea.vmem %s6, %s243
      %v245 = vld [vmem:[%s241] sm:$0x7]
      %v246 = vlaneseq
      %v247 = vshrl.u32 %v246, 7
      %v248 = vsub.s32 0, %v247
      %v249 = vrot.slane %v245, %v248
      %v250 = vlaneseq
      %v251 = vshrl.u32 %v250, 7
      %v252 = vsub.s32 1, %v251
      %v253 = vrot.slane %v245, %v252
      %v254 = vlaneseq
      %v255 = vshrl.u32 %v254, 7
      %v256 = vsub.s32 2, %v255
      %v257 = vrot.slane %v245, %v256
      %v258 = vld [vmem:[%s1] sm:$0xff]
      %v259 = vld [vmem:[%s1 + $0x8] sm:$0xff]
      %v260 = vld [vmem:[%s1 + $0x10] sm:$0xff]
      %v261 = vld [vmem:[%s1 + $0x18] sm:$0xff]
      %v262 = vld [vmem:[%s1 + $0x20] sm:$0xff]
      %v263 = vld [vmem:[%s1 + $0x28] sm:$0xff]
      %265 = vset.pattern.permute.xlu0 0
      %266 = vperm.xlu0 %265, %v258
      %v267 = vpop.permute.xlu0 %266
      %270 = vset.pattern.permute.xlu0 0
      %271 = vperm.xlu0 %270, %v259
      %v272 = vpop.permute.xlu0 %271
      %275 = vset.pattern.permute.xlu0 0
      %276 = vperm.xlu0 %275, %v260
      %v277 = vpop.permute.xlu0 %276
      %280 = vset.pattern.permute.xlu0 0
      %281 = vperm.xlu0 %280, %v261
      %v282 = vpop.permute.xlu0 %281
      %285 = vset.pattern.permute.xlu0 0
      %286 = vperm.xlu0 %285, %v262
      %v287 = vpop.permute.xlu0 %286
      %290 = vset.pattern.permute.xlu0 0
      %291 = vperm.xlu0 %290, %v263
      %v292 = vpop.permute.xlu0 %291
      %v294 = vmul.f32 %v249, %v267
      %v295 = vmul.f32 %v249, %v272
      %v296 = vmul.f32 %v253, %v277
      %v297 = vmul.f32 %v253, %v282
      %v298 = vmul.f32 %v257, %v287
      %v299 = vmul.f32 %v257, %v292
      %v300 = vld [vmem:[%s2] sm:$0xff]
      %v301 = vld [vmem:[%s2 + $0x8] sm:$0xff]
      %v302 = vld [vmem:[%s2 + $0x10] sm:$0xff]
      %v303 = vld [vmem:[%s2 + $0x18] sm:$0xff]
      %v304 = vld [vmem:[%s2 + $0x20] sm:$0xff]
      %v305 = vld [vmem:[%s2 + $0x28] sm:$0xff]
      %307 = vset.pattern.permute.xlu0 0
      %308 = vperm.xlu0 %307, %v300
      %v309 = vpop.permute.xlu0 %308
      %312 = vset.pattern.permute.xlu0 0
      %313 = vperm.xlu0 %312, %v301
      %v314 = vpop.permute.xlu0 %313
      %317 = vset.pattern.permute.xlu0 0
      %318 = vperm.xlu0 %317, %v302
      %v319 = vpop.permute.xlu0 %318
      %322 = vset.pattern.permute.xlu0 0
      %323 = vperm.xlu0 %322, %v303
      %v324 = vpop.permute.xlu0 %323
      %327 = vset.pattern.permute.xlu0 0
      %328 = vperm.xlu0 %327, %v304
      %v329 = vpop.permute.xlu0 %328
      %332 = vset.pattern.permute.xlu0 0
      %333 = vperm.xlu0 %332, %v305
      %v334 = vpop.permute.xlu0 %333
      %v336 = vadd.f32 %v294, %v309
      %v337 = vadd.f32 %v295, %v314
      %v338 = vadd.f32 %v296, %v319
      %v339 = vadd.f32 %v297, %v324
      %v340 = vadd.f32 %v298, %v329
      %v341 = vadd.f32 %v299, %v334
      %v342 = vand.u32 2147483647, %v336
      %vm343 = vcmp.le.f32.partialorder %v342, 0.7853982
      %vm344 = vcmp.lt.s32.totalorder %v336, 0
      %v345 = vand.u32 %v336, 2139095040
      %v346 = vshrl.u32 %v345, 23
      %v347 = vsub.s32 %v346, 127
      %v348 = vand.u32 2147483647, %v336
      %v349 = vand.u32 %v348, 8388607
      %v350 = vor.u32 %v349, 8388608
      %v351 = vsub.s32 0, %v350
      %v352 = vadd.s32 %v347, 1
      %vm353 = vcmp.gt.s32.totalorder %v352, 0
      %v354 = vsel %vm353, %v352, 0
      %v355 = vshrl.u32 %v354, 5
      %v356 = vand.u32 %v354, 31
      %v357 = vsub.s32 32, %v356
      %v358 = vshrl.u32 683565275, %v357
      %v359 = vshll.u32 683565275, %v356
      %v360 = vshrl.u32 2475754826, %v357
      %v361 = vor.u32 %v359, %v360
      %v362 = vshll.u32 2475754826, %v356
      %v363 = vshrl.u32 2131351028, %v357
      %v364 = vor.u32 %v362, %v363
      %v365 = vshll.u32 2131351028, %v356
      %v366 = vshrl.u32 2102212464, %v357
      %v367 = vor.u32 %v365, %v366
      %v368 = vshll.u32 2102212464, %v356
      %v369 = vshrl.u32 920167782, %v357
      %v370 = vor.u32 %v368, %v369
      %v371 = vshll.u32 920167782, %v356
      %v372 = vshrl.u32 1326507024, %v357
      %v373 = vor.u32 %v371, %v372
      %vm374 = vcmp.lt.s32.totalorder %v355, 1
      %vm375 = vcmp.lt.s32.totalorder %v355, 2
      %vm376 = vcmp.lt.s32.totalorder %v355, 3
      %vm377 = vcmp.lt.s32.totalorder %v355, 4
      %v378 = vsel %vm374, %v358, %v361
      %v379 = vsel %vm377, %v367, 2102212464
      %v380 = vsel %vm376, %v364, %v379
      %v381 = vsel %vm375, %v378, %v380
      %v382 = vsel %vm374, %v361, %v364
      %v383 = vsel %vm377, %v370, 920167782
      %v384 = vsel %vm376, %v367, %v383
      %v385 = vsel %vm375, %v382, %v384
      %v386 = vsel %vm374, %v364, %v367
      %v387 = vsel %vm377, %v373, 1326507024
      %v388 = vsel %vm376, %v370, %v387
      %v389 = vsel %vm375, %v386, %v388
      %v390 = vshll.u32 %v350, 8
      %v391 = vmul.u32.u64.compose %v390, %v389
      %v392 = vextract.low.u32 %v391
      %v393 = vextract.high.u32 %v391
      %v394 = vmul.u32.u64.compose %v390, %v385
      %v395 = vextract.low.u32 %v394
      %v396 = vextract.high.u32 %v394
      %v397 = vmul.u32 %v390, %v381
      %v398 = vadd.s32 %v393, %v395
      %vm399 = vc.u32 %v393, %v395
      %v400 = vadd.s32 %v396, 1
      %v401 = vsel %vm399, %v400, %v396
      %v402 = vadd.s32 %v397, %v401
      %v403 = vadd.s32 %v402, 536870912
      %v404 = vshrl.u32 %v403, 30
      %v405 = vshll.u32 %v404, 30
      %v406 = vsub.s32 %v402, %v405
      %vm407 = vcmp.lt.s32.totalorder %v406, 0
      %v408 = vsub.s32 0, %v406
      %v409 = vsel %vm407, %v408, %v406
      %v410 = vclz %v409
      %v411 = vsub.s32 %v410, 2
      %vm412 = vcmp.gt.s32.totalorder 0, %v411
      %v413 = vsel %vm412, 0, %v411
      %v414 = vsub.s32 32, %v413
      %v415 = vshll.u32 %v406, %v413
      %v416 = vshrl.u32 %v398, %v414
      %v417 = vor.u32 %v415, %v416
      %v418 = vsub.s32 4294967266, %v413
      %v419 = vadd.s32 %v418, 127
      %v420 = vshll.u32 %v419, 23
      %v421 = vor.u32 4788187, %v420
      %v422 = vand.u32 2147483647, %v421
      %v424 = vcvt.s32.f32 %v417
      %v425 = vmul.f32 %v424, %v422
      %v426 = vxor.u32 %v425, 2147483648
      %v427 = vsel %vm344, %v426, %v425
      %v428 = vsub.s32 4, %v404
      %v429 = vsel %vm344, %v428, %v404
      %v430 = vsel %vm343, %v336, %v427
      %v431 = vsel %vm343, 0, %v429
      %v432 = vcosq.f32.pop %v430
      %v433 = vsinq.f32.pop %v430
      %vm434 = vweird.f32 %v336
      %v435 = vadd.s32 %v431, 3
      %v436 = vand.u32 %v435, 3
      %vm437 = vcmp.lt.s32.totalorder %v436, 2
      %vm438 = vcmp.eq.s32.totalorder %v436, 0
      %v439 = vxor.u32 %v433, 2147483648
      %v440 = vsel %vm438, %v432, %v439
      %vm441 = vcmp.eq.s32.totalorder %v436, 2
      %v442 = vxor.u32 %v432, 2147483648
      %v443 = vsel %vm441, %v442, %v433
      %v444 = vsel %vm437, %v440, %v443
      %v445 = vsel %vm434, nan, %v444
      %v446 = vand.u32 2147483647, %v337
      %vm447 = vcmp.le.f32.partialorder %v446, 0.7853982
      %vm448 = vcmp.lt.s32.totalorder %v337, 0
      %v449 = vand.u32 %v337, 2139095040
      %v450 = vshrl.u32 %v449, 23
      %v451 = vsub.s32 %v450, 127
      %v452 = vand.u32 2147483647, %v337
      %v453 = vand.u32 %v452, 8388607
      %v454 = vor.u32 %v453, 8388608
      %v455 = vsub.s32 0, %v454
      %v456 = vadd.s32 %v451, 1
      %vm457 = vcmp.gt.s32.totalorder %v456, 0
      %v458 = vsel %vm457, %v456, 0
      %v459 = vshrl.u32 %v458, 5
      %v460 = vand.u32 %v458, 31
      %v461 = vsub.s32 32, %v460
      %v462 = vshrl.u32 683565275, %v461
      %v463 = vshll.u32 683565275, %v460
      %v464 = vshrl.u32 2475754826, %v461
      %v465 = vor.u32 %v463, %v464
      %v466 = vshll.u32 2475754826, %v460
      %v467 = vshrl.u32 2131351028, %v461
      %v468 = vor.u32 %v466, %v467
      %v469 = vshll.u32 2131351028, %v460
      %v470 = vshrl.u32 2102212464, %v461
      %v471 = vor.u32 %v469, %v470
      %v472 = vshll.u32 2102212464, %v460
      %v473 = vshrl.u32 920167782, %v461
      %v474 = vor.u32 %v472, %v473
      %v475 = vshll.u32 920167782, %v460
      %v476 = vshrl.u32 1326507024, %v461
      %v477 = vor.u32 %v475, %v476
      %vm478 = vcmp.lt.s32.totalorder %v459, 1
      %vm479 = vcmp.lt.s32.totalorder %v459, 2
      %vm480 = vcmp.lt.s32.totalorder %v459, 3
      %vm481 = vcmp.lt.s32.totalorder %v459, 4
      %v482 = vsel %vm478, %v462, %v465
      %v483 = vsel %vm481, %v471, 2102212464
      %v484 = vsel %vm480, %v468, %v483
      %v485 = vsel %vm479, %v482, %v484
      %v486 = vsel %vm478, %v465, %v468
      %v487 = vsel %vm481, %v474, 920167782
      %v488 = vsel %vm480, %v471, %v487
      %v489 = vsel %vm479, %v486, %v488
      %v490 = vsel %vm478, %v468, %v471
      %v491 = vsel %vm481, %v477, 1326507024
      %v492 = vsel %vm480, %v474, %v491
      %v493 = vsel %vm479, %v490, %v492
      %v494 = vshll.u32 %v454, 8
      %v495 = vmul.u32.u64.compose %v494, %v493
      %v496 = vextract.low.u32 %v495
      %v497 = vextract.high.u32 %v495
      %v498 = vmul.u32.u64.compose %v494, %v489
      %v499 = vextract.low.u32 %v498
      %v500 = vextract.high.u32 %v498
      %v501 = vmul.u32 %v494, %v485
      %v502 = vadd.s32 %v497, %v499
      %vm503 = vc.u32 %v497, %v499
      %v504 = vadd.s32 %v500, 1
      %v505 = vsel %vm503, %v504, %v500
      %v506 = vadd.s32 %v501, %v505
      %v507 = vadd.s32 %v506, 536870912
      %v508 = vshrl.u32 %v507, 30
      %v509 = vshll.u32 %v508, 30
      %v510 = vsub.s32 %v506, %v509
      %vm511 = vcmp.lt.s32.totalorder %v510, 0
      %v512 = vsub.s32 0, %v510
      %v513 = vsel %vm511, %v512, %v510
      %v514 = vclz %v513
      %v515 = vsub.s32 %v514, 2
      %vm516 = vcmp.gt.s32.totalorder 0, %v515
      %v517 = vsel %vm516, 0, %v515
      %v518 = vsub.s32 32, %v517
      %v519 = vshll.u32 %v510, %v517
      %v520 = vshrl.u32 %v502, %v518
      %v521 = vor.u32 %v519, %v520
      %v522 = vsub.s32 4294967266, %v517
      %v523 = vadd.s32 %v522, 127
      %v524 = vshll.u32 %v523, 23
      %v525 = vor.u32 4788187, %v524
      %v526 = vand.u32 2147483647, %v525
      %v528 = vcvt.s32.f32 %v521
      %v529 = vmul.f32 %v528, %v526
      %v530 = vxor.u32 %v529, 2147483648
      %v531 = vsel %vm448, %v530, %v529
      %v532 = vsub.s32 4, %v508
      %v533 = vsel %vm448, %v532, %v508
      %v534 = vsel %vm447, %v337, %v531
      %v535 = vsel %vm447, 0, %v533
      %v536 = vcosq.f32.pop %v534
      %v537 = vsinq.f32.pop %v534
      %vm538 = vweird.f32 %v337
      %v539 = vadd.s32 %v535, 3
      %v540 = vand.u32 %v539, 3
      %vm541 = vcmp.lt.s32.totalorder %v540, 2
      %vm542 = vcmp.eq.s32.totalorder %v540, 0
      %v543 = vxor.u32 %v537, 2147483648
      %v544 = vsel %vm542, %v536, %v543
      %vm545 = vcmp.eq.s32.totalorder %v540, 2
      %v546 = vxor.u32 %v536, 2147483648
      %v547 = vsel %vm545, %v546, %v537
      %v548 = vsel %vm541, %v544, %v547
      %v549 = vsel %vm538, nan, %v548
      %v550 = vand.u32 2147483647, %v338
      %vm551 = vcmp.le.f32.partialorder %v550, 0.7853982
      %vm552 = vcmp.lt.s32.totalorder %v338, 0
      %v553 = vand.u32 %v338, 2139095040
      %v554 = vshrl.u32 %v553, 23
      %v555 = vsub.s32 %v554, 127
      %v556 = vand.u32 2147483647, %v338
      %v557 = vand.u32 %v556, 8388607
      %v558 = vor.u32 %v557, 8388608
      %v559 = vsub.s32 0, %v558
      %v560 = vadd.s32 %v555, 1
      %vm561 = vcmp.gt.s32.totalorder %v560, 0
      %v562 = vsel %vm561, %v560, 0
      %v563 = vshrl.u32 %v562, 5
      %v564 = vand.u32 %v562, 31
      %v565 = vsub.s32 32, %v564
      %v566 = vshrl.u32 683565275, %v565
      %v567 = vshll.u32 683565275, %v564
      %v568 = vshrl.u32 2475754826, %v565
      %v569 = vor.u32 %v567, %v568
      %v570 = vshll.u32 2475754826, %v564
      %v571 = vshrl.u32 2131351028, %v565
      %v572 = vor.u32 %v570, %v571
      %v573 = vshll.u32 2131351028, %v564
      %v574 = vshrl.u32 2102212464, %v565
      %v575 = vor.u32 %v573, %v574
      %v576 = vshll.u32 2102212464, %v564
      %v577 = vshrl.u32 920167782, %v565
      %v578 = vor.u32 %v576, %v577
      %v579 = vshll.u32 920167782, %v564
      %v580 = vshrl.u32 1326507024, %v565
      %v581 = vor.u32 %v579, %v580
      %vm582 = vcmp.lt.s32.totalorder %v563, 1
      %vm583 = vcmp.lt.s32.totalorder %v563, 2
      %vm584 = vcmp.lt.s32.totalorder %v563, 3
      %vm585 = vcmp.lt.s32.totalorder %v563, 4
      %v586 = vsel %vm582, %v566, %v569
      %v587 = vsel %vm585, %v575, 2102212464
      %v588 = vsel %vm584, %v572, %v587
      %v589 = vsel %vm583, %v586, %v588
      %v590 = vsel %vm582, %v569, %v572
      %v591 = vsel %vm585, %v578, 920167782
      %v592 = vsel %vm584, %v575, %v591
      %v593 = vsel %vm583, %v590, %v592
      %v594 = vsel %vm582, %v572, %v575
      %v595 = vsel %vm585, %v581, 1326507024
      %v596 = vsel %vm584, %v578, %v595
      %v597 = vsel %vm583, %v594, %v596
      %v598 = vshll.u32 %v558, 8
      %v599 = vmul.u32.u64.compose %v598, %v597
      %v600 = vextract.low.u32 %v599
      %v601 = vextract.high.u32 %v599
      %v602 = vmul.u32.u64.compose %v598, %v593
      %v603 = vextract.low.u32 %v602
      %v604 = vextract.high.u32 %v602
      %v605 = vmul.u32 %v598, %v589
      %v606 = vadd.s32 %v601, %v603
      %vm607 = vc.u32 %v601, %v603
      %v608 = vadd.s32 %v604, 1
      %v609 = vsel %vm607, %v608, %v604
      %v610 = vadd.s32 %v605, %v609
      %v611 = vadd.s32 %v610, 536870912
      %v612 = vshrl.u32 %v611, 30
      %v613 = vshll.u32 %v612, 30
      %v614 = vsub.s32 %v610, %v613
      %vm615 = vcmp.lt.s32.totalorder %v614, 0
      %v616 = vsub.s32 0, %v614
      %v617 = vsel %vm615, %v616, %v614
      %v618 = vclz %v617
      %v619 = vsub.s32 %v618, 2
      %vm620 = vcmp.gt.s32.totalorder 0, %v619
      %v621 = vsel %vm620, 0, %v619
      %v622 = vsub.s32 32, %v621
      %v623 = vshll.u32 %v614, %v621
      %v624 = vshrl.u32 %v606, %v622
      %v625 = vor.u32 %v623, %v624
      %v626 = vsub.s32 4294967266, %v621
      %v627 = vadd.s32 %v626, 127
      %v628 = vshll.u32 %v627, 23
      %v629 = vor.u32 4788187, %v628
      %v630 = vand.u32 2147483647, %v629
      %v632 = vcvt.s32.f32 %v625
      %v633 = vmul.f32 %v632, %v630
      %v634 = vxor.u32 %v633, 2147483648
      %v635 = vsel %vm552, %v634, %v633
      %v636 = vsub.s32 4, %v612
      %v637 = vsel %vm552, %v636, %v612
      %v638 = vsel %vm551, %v338, %v635
      %v639 = vsel %vm551, 0, %v637
      %v640 = vcosq.f32.pop %v638
      %v641 = vsinq.f32.pop %v638
      %vm642 = vweird.f32 %v338
      %v643 = vadd.s32 %v639, 3
      %v644 = vand.u32 %v643, 3
      %vm645 = vcmp.lt.s32.totalorder %v644, 2
      %vm646 = vcmp.eq.s32.totalorder %v644, 0
      %v647 = vxor.u32 %v641, 2147483648
      %v648 = vsel %vm646, %v640, %v647
      %vm649 = vcmp.eq.s32.totalorder %v644, 2
      %v650 = vxor.u32 %v640, 2147483648
      %v651 = vsel %vm649, %v650, %v641
      %v652 = vsel %vm645, %v648, %v651
      %v653 = vsel %vm642, nan, %v652
      %v654 = vand.u32 2147483647, %v339
      %vm655 = vcmp.le.f32.partialorder %v654, 0.7853982
      %vm656 = vcmp.lt.s32.totalorder %v339, 0
      %v657 = vand.u32 %v339, 2139095040
      %v658 = vshrl.u32 %v657, 23
      %v659 = vsub.s32 %v658, 127
      %v660 = vand.u32 2147483647, %v339
      %v661 = vand.u32 %v660, 8388607
      %v662 = vor.u32 %v661, 8388608
      %v663 = vsub.s32 0, %v662
      %v664 = vadd.s32 %v659, 1
      %vm665 = vcmp.gt.s32.totalorder %v664, 0
      %v666 = vsel %vm665, %v664, 0
      %v667 = vshrl.u32 %v666, 5
      %v668 = vand.u32 %v666, 31
      %v669 = vsub.s32 32, %v668
      %v670 = vshrl.u32 683565275, %v669
      %v671 = vshll.u32 683565275, %v668
      %v672 = vshrl.u32 2475754826, %v669
      %v673 = vor.u32 %v671, %v672
      %v674 = vshll.u32 2475754826, %v668
      %v675 = vshrl.u32 2131351028, %v669
      %v676 = vor.u32 %v674, %v675
      %v677 = vshll.u32 2131351028, %v668
      %v678 = vshrl.u32 2102212464, %v669
      %v679 = vor.u32 %v677, %v678
      %v680 = vshll.u32 2102212464, %v668
      %v681 = vshrl.u32 920167782, %v669
      %v682 = vor.u32 %v680, %v681
      %v683 = vshll.u32 920167782, %v668
      %v684 = vshrl.u32 1326507024, %v669
      %v685 = vor.u32 %v683, %v684
      %vm686 = vcmp.lt.s32.totalorder %v667, 1
      %vm687 = vcmp.lt.s32.totalorder %v667, 2
      %vm688 = vcmp.lt.s32.totalorder %v667, 3
      %vm689 = vcmp.lt.s32.totalorder %v667, 4
      %v690 = vsel %vm686, %v670, %v673
      %v691 = vsel %vm689, %v679, 2102212464
      %v692 = vsel %vm688, %v676, %v691
      %v693 = vsel %vm687, %v690, %v692
      %v694 = vsel %vm686, %v673, %v676
      %v695 = vsel %vm689, %v682, 920167782
      %v696 = vsel %vm688, %v679, %v695
      %v697 = vsel %vm687, %v694, %v696
      %v698 = vsel %vm686, %v676, %v679
      %v699 = vsel %vm689, %v685, 1326507024
      %v700 = vsel %vm688, %v682, %v699
      %v701 = vsel %vm687, %v698, %v700
      %v702 = vshll.u32 %v662, 8
      %v703 = vmul.u32.u64.compose %v702, %v701
      %v704 = vextract.low.u32 %v703
      %v705 = vextract.high.u32 %v703
      %v706 = vmul.u32.u64.compose %v702, %v697
      %v707 = vextract.low.u32 %v706
      %v708 = vextract.high.u32 %v706
      %v709 = vmul.u32 %v702, %v693
      %v710 = vadd.s32 %v705, %v707
      %vm711 = vc.u32 %v705, %v707
      %v712 = vadd.s32 %v708, 1
      %v713 = vsel %vm711, %v712, %v708
      %v714 = vadd.s32 %v709, %v713
      %v715 = vadd.s32 %v714, 536870912
      %v716 = vshrl.u32 %v715, 30
      %v717 = vshll.u32 %v716, 30
      %v718 = vsub.s32 %v714, %v717
      %vm719 = vcmp.lt.s32.totalorder %v718, 0
      %v720 = vsub.s32 0, %v718
      %v721 = vsel %vm719, %v720, %v718
      %v722 = vclz %v721
      %v723 = vsub.s32 %v722, 2
      %vm724 = vcmp.gt.s32.totalorder 0, %v723
      %v725 = vsel %vm724, 0, %v723
      %v726 = vsub.s32 32, %v725
      %v727 = vshll.u32 %v718, %v725
      %v728 = vshrl.u32 %v710, %v726
      %v729 = vor.u32 %v727, %v728
      %v730 = vsub.s32 4294967266, %v725
      %v731 = vadd.s32 %v730, 127
      %v732 = vshll.u32 %v731, 23
      %v733 = vor.u32 4788187, %v732
      %v734 = vand.u32 2147483647, %v733
      %v736 = vcvt.s32.f32 %v729
      %v737 = vmul.f32 %v736, %v734
      %v738 = vxor.u32 %v737, 2147483648
      %v739 = vsel %vm656, %v738, %v737
      %v740 = vsub.s32 4, %v716
      %v741 = vsel %vm656, %v740, %v716
      %v742 = vsel %vm655, %v339, %v739
      %v743 = vsel %vm655, 0, %v741
      %v744 = vcosq.f32.pop %v742
      %v745 = vsinq.f32.pop %v742
      %vm746 = vweird.f32 %v339
      %v747 = vadd.s32 %v743, 3
      %v748 = vand.u32 %v747, 3
      %vm749 = vcmp.lt.s32.totalorder %v748, 2
      %vm750 = vcmp.eq.s32.totalorder %v748, 0
      %v751 = vxor.u32 %v745, 2147483648
      %v752 = vsel %vm750, %v744, %v751
      %vm753 = vcmp.eq.s32.totalorder %v748, 2
      %v754 = vxor.u32 %v744, 2147483648
      %v755 = vsel %vm753, %v754, %v745
      %v756 = vsel %vm749, %v752, %v755
      %v757 = vsel %vm746, nan, %v756
      %v758 = vand.u32 2147483647, %v340
      %vm759 = vcmp.le.f32.partialorder %v758, 0.7853982
      %vm760 = vcmp.lt.s32.totalorder %v340, 0
      %v761 = vand.u32 %v340, 2139095040
      %v762 = vshrl.u32 %v761, 23
      %v763 = vsub.s32 %v762, 127
      %v764 = vand.u32 2147483647, %v340
      %v765 = vand.u32 %v764, 8388607
      %v766 = vor.u32 %v765, 8388608
      %v767 = vsub.s32 0, %v766
      %v768 = vadd.s32 %v763, 1
      %vm769 = vcmp.gt.s32.totalorder %v768, 0
      %v770 = vsel %vm769, %v768, 0
      %v771 = vshrl.u32 %v770, 5
      %v772 = vand.u32 %v770, 31
      %v773 = vsub.s32 32, %v772
      %v774 = vshrl.u32 683565275, %v773
      %v775 = vshll.u32 683565275, %v772
      %v776 = vshrl.u32 2475754826, %v773
      %v777 = vor.u32 %v775, %v776
      %v778 = vshll.u32 2475754826, %v772
      %v779 = vshrl.u32 2131351028, %v773
      %v780 = vor.u32 %v778, %v779
      %v781 = vshll.u32 2131351028, %v772
      %v782 = vshrl.u32 2102212464, %v773
      %v783 = vor.u32 %v781, %v782
      %v784 = vshll.u32 2102212464, %v772
      %v785 = vshrl.u32 920167782, %v773
      %v786 = vor.u32 %v784, %v785
      %v787 = vshll.u32 920167782, %v772
      %v788 = vshrl.u32 1326507024, %v773
      %v789 = vor.u32 %v787, %v788
      %vm790 = vcmp.lt.s32.totalorder %v771, 1
      %vm791 = vcmp.lt.s32.totalorder %v771, 2
      %vm792 = vcmp.lt.s32.totalorder %v771, 3
      %vm793 = vcmp.lt.s32.totalorder %v771, 4
      %v794 = vsel %vm790, %v774, %v777
      %v795 = vsel %vm793, %v783, 2102212464
      %v796 = vsel %vm792, %v780, %v795
      %v797 = vsel %vm791, %v794, %v796
      %v798 = vsel %vm790, %v777, %v780
      %v799 = vsel %vm793, %v786, 920167782
      %v800 = vsel %vm792, %v783, %v799
      %v801 = vsel %vm791, %v798, %v800
      %v802 = vsel %vm790, %v780, %v783
      %v803 = vsel %vm793, %v789, 1326507024
      %v804 = vsel %vm792, %v786, %v803
      %v805 = vsel %vm791, %v802, %v804
      %v806 = vshll.u32 %v766, 8
      %v807 = vmul.u32.u64.compose %v806, %v805
      %v808 = vextract.low.u32 %v807
      %v809 = vextract.high.u32 %v807
      %v810 = vmul.u32.u64.compose %v806, %v801
      %v811 = vextract.low.u32 %v810
      %v812 = vextract.high.u32 %v810
      %v813 = vmul.u32 %v806, %v797
      %v814 = vadd.s32 %v809, %v811
      %vm815 = vc.u32 %v809, %v811
      %v816 = vadd.s32 %v812, 1
      %v817 = vsel %vm815, %v816, %v812
      %v818 = vadd.s32 %v813, %v817
      %v819 = vadd.s32 %v818, 536870912
      %v820 = vshrl.u32 %v819, 30
      %v821 = vshll.u32 %v820, 30
      %v822 = vsub.s32 %v818, %v821
      %vm823 = vcmp.lt.s32.totalorder %v822, 0
      %v824 = vsub.s32 0, %v822
      %v825 = vsel %vm823, %v824, %v822
      %v826 = vclz %v825
      %v827 = vsub.s32 %v826, 2
      %vm828 = vcmp.gt.s32.totalorder 0, %v827
      %v829 = vsel %vm828, 0, %v827
      %v830 = vsub.s32 32, %v829
      %v831 = vshll.u32 %v822, %v829
      %v832 = vshrl.u32 %v814, %v830
      %v833 = vor.u32 %v831, %v832
      %v834 = vsub.s32 4294967266, %v829
      %v835 = vadd.s32 %v834, 127
      %v836 = vshll.u32 %v835, 23
      %v837 = vor.u32 4788187, %v836
      %v838 = vand.u32 2147483647, %v837
      %v840 = vcvt.s32.f32 %v833
      %v841 = vmul.f32 %v840, %v838
      %v842 = vxor.u32 %v841, 2147483648
      %v843 = vsel %vm760, %v842, %v841
      %v844 = vsub.s32 4, %v820
      %v845 = vsel %vm760, %v844, %v820
      %v846 = vsel %vm759, %v340, %v843
      %v847 = vsel %vm759, 0, %v845
      %v848 = vcosq.f32.pop %v846
      %v849 = vsinq.f32.pop %v846
      %vm850 = vweird.f32 %v340
      %v851 = vadd.s32 %v847, 3
      %v852 = vand.u32 %v851, 3
      %vm853 = vcmp.lt.s32.totalorder %v852, 2
      %vm854 = vcmp.eq.s32.totalorder %v852, 0
      %v855 = vxor.u32 %v849, 2147483648
      %v856 = vsel %vm854, %v848, %v855
      %vm857 = vcmp.eq.s32.totalorder %v852, 2
      %v858 = vxor.u32 %v848, 2147483648
      %v859 = vsel %vm857, %v858, %v849
      %v860 = vsel %vm853, %v856, %v859
      %v861 = vsel %vm850, nan, %v860
      %v862 = vand.u32 2147483647, %v341
      %vm863 = vcmp.le.f32.partialorder %v862, 0.7853982
      %vm864 = vcmp.lt.s32.totalorder %v341, 0
      %v865 = vand.u32 %v341, 2139095040
      %v866 = vshrl.u32 %v865, 23
      %v867 = vsub.s32 %v866, 127
      %v868 = vand.u32 2147483647, %v341
      %v869 = vand.u32 %v868, 8388607
      %v870 = vor.u32 %v869, 8388608
      %v871 = vsub.s32 0, %v870
      %v872 = vadd.s32 %v867, 1
      %vm873 = vcmp.gt.s32.totalorder %v872, 0
      %v874 = vsel %vm873, %v872, 0
      %v875 = vshrl.u32 %v874, 5
      %v876 = vand.u32 %v874, 31
      %v877 = vsub.s32 32, %v876
      %v878 = vshrl.u32 683565275, %v877
      %v879 = vshll.u32 683565275, %v876
      %v880 = vshrl.u32 2475754826, %v877
      %v881 = vor.u32 %v879, %v880
      %v882 = vshll.u32 2475754826, %v876
      %v883 = vshrl.u32 2131351028, %v877
      %v884 = vor.u32 %v882, %v883
      %v885 = vshll.u32 2131351028, %v876
      %v886 = vshrl.u32 2102212464, %v877
      %v887 = vor.u32 %v885, %v886
      %v888 = vshll.u32 2102212464, %v876
      %v889 = vshrl.u32 920167782, %v877
      %v890 = vor.u32 %v888, %v889
      %v891 = vshll.u32 920167782, %v876
      %v892 = vshrl.u32 1326507024, %v877
      %v893 = vor.u32 %v891, %v892
      %vm894 = vcmp.lt.s32.totalorder %v875, 1
      %vm895 = vcmp.lt.s32.totalorder %v875, 2
      %vm896 = vcmp.lt.s32.totalorder %v875, 3
      %vm897 = vcmp.lt.s32.totalorder %v875, 4
      %v898 = vsel %vm894, %v878, %v881
      %v899 = vsel %vm897, %v887, 2102212464
      %v900 = vsel %vm896, %v884, %v899
      %v901 = vsel %vm895, %v898, %v900
      %v902 = vsel %vm894, %v881, %v884
      %v903 = vsel %vm897, %v890, 920167782
      %v904 = vsel %vm896, %v887, %v903
      %v905 = vsel %vm895, %v902, %v904
      %v906 = vsel %vm894, %v884, %v887
      %v907 = vsel %vm897, %v893, 1326507024
      %v908 = vsel %vm896, %v890, %v907
      %v909 = vsel %vm895, %v906, %v908
      %v910 = vshll.u32 %v870, 8
      %v911 = vmul.u32.u64.compose %v910, %v909
      %v912 = vextract.low.u32 %v911
      %v913 = vextract.high.u32 %v911
      %v914 = vmul.u32.u64.compose %v910, %v905
      %v915 = vextract.low.u32 %v914
      %v916 = vextract.high.u32 %v914
      %v917 = vmul.u32 %v910, %v901
      %v918 = vadd.s32 %v913, %v915
      %vm919 = vc.u32 %v913, %v915
      %v920 = vadd.s32 %v916, 1
      %v921 = vsel %vm919, %v920, %v916
      %v922 = vadd.s32 %v917, %v921
      %v923 = vadd.s32 %v922, 536870912
      %v924 = vshrl.u32 %v923, 30
      %v925 = vshll.u32 %v924, 30
      %v926 = vsub.s32 %v922, %v925
      %vm927 = vcmp.lt.s32.totalorder %v926, 0
      %v928 = vsub.s32 0, %v926
      %v929 = vsel %vm927, %v928, %v926
      %v930 = vclz %v929
      %v931 = vsub.s32 %v930, 2
      %vm932 = vcmp.gt.s32.totalorder 0, %v931
      %v933 = vsel %vm932, 0, %v931
      %v934 = vsub.s32 32, %v933
      %v935 = vshll.u32 %v926, %v933
      %v936 = vshrl.u32 %v918, %v934
      %v937 = vor.u32 %v935, %v936
      %v938 = vsub.s32 4294967266, %v933
      %v939 = vadd.s32 %v938, 127
      %v940 = vshll.u32 %v939, 23
      %v941 = vor.u32 4788187, %v940
      %v942 = vand.u32 2147483647, %v941
      %v944 = vcvt.s32.f32 %v937
      %v945 = vmul.f32 %v944, %v942
      %v946 = vxor.u32 %v945, 2147483648
      %v947 = vsel %vm864, %v946, %v945
      %v948 = vsub.s32 4, %v924
      %v949 = vsel %vm864, %v948, %v924
      %v950 = vsel %vm863, %v341, %v947
      %v951 = vsel %vm863, 0, %v949
      %v952 = vcosq.f32.pop %v950
      %v953 = vsinq.f32.pop %v950
      %vm954 = vweird.f32 %v341
      %v955 = vadd.s32 %v951, 3
      %v956 = vand.u32 %v955, 3
      %vm957 = vcmp.lt.s32.totalorder %v956, 2
      %vm958 = vcmp.eq.s32.totalorder %v956, 0
      %v959 = vxor.u32 %v953, 2147483648
      %v960 = vsel %vm958, %v952, %v959
      %vm961 = vcmp.eq.s32.totalorder %v956, 2
      %v962 = vxor.u32 %v952, 2147483648
      %v963 = vsel %vm961, %v962, %v953
      %v964 = vsel %vm957, %v960, %v963
      %v965 = vsel %vm954, nan, %v964
      %v966 = vld [vmem:[%s3] sm:$0xff]
      %v967 = vld [vmem:[%s3 + $0x8] sm:$0xff]
      %v968 = vld [vmem:[%s3 + $0x10] sm:$0xff]
      %v969 = vld [vmem:[%s3 + $0x18] sm:$0xff]
      %v970 = vld [vmem:[%s3 + $0x20] sm:$0xff]
      %v971 = vld [vmem:[%s3 + $0x28] sm:$0xff]
      %v972 = vld [vmem:[%s3 + $0x30] sm:$0xff]
      %v973 = vld [vmem:[%s3 + $0x38] sm:$0xff]
      %vm974 = vcmask 392192
      %v976 = vsel %vm974, %v966, 0
      %v979 = vsel %vm974, %v967, 0
      %v982 = vsel %vm974, %v968, 0
      %v985 = vsel %vm974, %v969, 0
      %v988 = vsel %vm974, %v970, 0
      %v991 = vsel %vm974, %v971, 0
      %v994 = vsel %vm974, %v972, 0
      %v997 = vsel %vm974, %v973, 0
      %999 = vmatprep.subr.mxu0 0.0
      %1000 = vmatpush1.msra.mxu0 %v445
      %1001 = vmatprep.subr.mxu0 0.0
      %1002 = vmatpush1.msra.mxu0 %v549
      %1003 = vmatprep.subr.mxu0 0.0
      %1004 = vmatpush1.msra.mxu0 %v653
      %1005 = vmatprep.subr.mxu0 0.0
      %1006 = vmatpush1.msra.mxu0 %v757
      %1007 = vmatprep.subr.mxu0 0.0
      %1008 = vmatpush1.msra.mxu0 %v861
      %1009 = vmatprep.subr.mxu0 0.0
      %1010 = vmatpush1.msra.mxu0 %v965
      %1011 = vmatprep.subr.mxu0 0.0
      %1012 = vmatpush1.msra.mxu0 0.0
      %1013 = vmatprep.subr.mxu0 0.0
      %1014 = vmatpush1.msra.mxu0 0.0
      %1015 = vmatprep.subr.mxu0 0.0
      %1016 = vmatpush1.msra.mxu0 0.0
      %1017 = vmatprep.subr.mxu0 0.0
      %1018 = vmatpush1.msra.mxu0 0.0
      %1019 = vmatprep.subr.mxu0 0.0
      %1020 = vmatpush1.msra.mxu0 0.0
      %1021 = vmatprep.subr.mxu0 0.0
      %1022 = vmatpush1.msra.mxu0 0.0
      %1023 = vmatprep.subr.mxu0 0.0
      %1024 = vmatpush1.msra.mxu0 0.0
      %1025 = vmatprep.subr.mxu0 0.0
      %1026 = vmatpush1.msra.mxu0 0.0
      %1027 = vmatprep.subr.mxu0 0.0
      %1028 = vmatpush1.msra.mxu0 0.0
      %1029 = vmatprep.subr.mxu0 0.0
      %1030 = vmatpush1.msra.mxu0 0.0
      %1031 = vmatprep.subr.mxu0 0.0
      %1032 = vmatpush1.msra.mxu0 0.0
      %1033 = vmatprep.subr.mxu0 0.0
      %1034 = vmatpush1.msra.mxu0 0.0
      %1035 = vmatprep.subr.mxu0 0.0
      %1036 = vmatpush1.msra.mxu0 0.0
      %1037 = vmatprep.subr.mxu0 0.0
      %1038 = vmatpush1.msra.mxu0 0.0
      %1039 = vmatprep.subr.mxu0 0.0
      %1040 = vmatpush1.msra.mxu0 0.0
      %1041 = vmatprep.subr.mxu0 0.0
      %1042 = vmatpush1.msra.mxu0 0.0
      %1043 = vmatprep.subr.mxu0 0.0
      %1044 = vmatpush1.msra.mxu0 0.0
      %1045 = vmatprep.subr.mxu0 0.0
      %1046 = vmatpush1.msra.mxu0 0.0
      %1047 = vmatprep.subr.mxu0 0.0
      %1048 = vmatpush1.msra.mxu0 0.0
      %1049 = vmatprep.subr.mxu0 0.0
      %1050 = vmatpush1.msra.mxu0 0.0
      %1051 = vmatprep.subr.mxu0 0.0
      %1052 = vmatpush1.msra.mxu0 0.0
      %1053 = vmatprep.subr.mxu0 0.0
      %1054 = vmatpush1.msra.mxu0 0.0
      %1055 = vmatprep.subr.mxu0 0.0
      %1056 = vmatpush1.msra.mxu0 0.0
      %1057 = vmatprep.subr.mxu0 0.0
      %1058 = vmatpush1.msra.mxu0 0.0
      %1059 = vmatprep.subr.mxu0 0.0
      %1060 = vmatpush1.msra.mxu0 0.0
      %1061 = vmatprep.subr.mxu0 0.0
      %1062 = vmatpush1.msra.mxu0 0.0
      %1063 = vmatprep.mubr.f32.mxu0 0.0
      %1064 = vmatmul.mubr.f32.gmra.mrb[0].mxu0 %v976
      %v1065 = vpop.f32.mrb[0].mxu0
      %v1066 = vadd.f32 0.0, %v1065
      %v1067 = vpop.f32.mrb[0].mxu0
      %1068 = vmatprep.mubr.f32.mxu0 0.0
      %1069 = vmatmul.mubr.f32.gmra.mrb[0].mxu0 %v979
      %v1070 = vpop.f32.mrb[0].mxu0
      %v1071 = vadd.f32 0.0, %v1070
      %v1072 = vpop.f32.mrb[0].mxu0
      %1073 = vmatprep.mubr.f32.mxu0 0.0
      %1074 = vmatmul.mubr.f32.gmra.mrb[0].mxu0 %v982
      %v1075 = vpop.f32.mrb[0].mxu0
      %v1076 = vadd.f32 0.0, %v1075
      %v1077 = vpop.f32.mrb[0].mxu0
      %1078 = vmatprep.mubr.f32.mxu0 0.0
      %1079 = vmatmul.mubr.f32.gmra.mrb[0].mxu0 %v985
      %v1080 = vpop.f32.mrb[0].mxu0
      %v1081 = vadd.f32 0.0, %v1080
      %v1082 = vpop.f32.mrb[0].mxu0
      %1083 = vmatprep.mubr.f32.mxu0 0.0
      %1084 = vmatmul.mubr.f32.gmra.mrb[0].mxu0 %v988
      %v1085 = vpop.f32.mrb[0].mxu0
      %v1086 = vadd.f32 0.0, %v1085
      %v1087 = vpop.f32.mrb[0].mxu0
      %1088 = vmatprep.mubr.f32.mxu0 0.0
      %1089 = vmatmul.mubr.f32.gmra.mrb[0].mxu0 %v991
      %v1090 = vpop.f32.mrb[0].mxu0
      %v1091 = vadd.f32 0.0, %v1090
      %v1092 = vpop.f32.mrb[0].mxu0
      %1093 = vmatprep.mubr.f32.mxu0 0.0
      %1094 = vmatmul.mubr.f32.gmra.mrb[0].mxu0 %v994
      %v1095 = vpop.f32.mrb[0].mxu0
      %v1096 = vadd.f32 0.0, %v1095
      %v1097 = vpop.f32.mrb[0].mxu0
      %1098 = vmatprep.mubr.f32.mxu0 0.0
      %1099 = vmatmul.mubr.f32.gmra.mrb[0].mxu0 %v997
      %v1100 = vpop.f32.mrb[0].mxu0
      %v1101 = vadd.f32 0.0, %v1100
      %v1102 = vpop.f32.mrb[0].mxu0
      %1103 = vdwg.mxu0
      %v1104 = vmax.f32 %v1066, 0.0
      %v1105 = vmax.f32 %v1071, 0.0
      %v1106 = vmax.f32 %v1076, 0.0
      %v1107 = vmax.f32 %v1081, 0.0
      %v1108 = vmax.f32 %v1086, 0.0
      %v1109 = vmax.f32 %v1091, 0.0
      %v1110 = vmax.f32 %v1096, 0.0
      %v1111 = vmax.f32 %v1101, 0.0
      %v1112 = vld [vmem:[%s4] sm:$0xff]
      %v1113 = vld [vmem:[%s4 + $0x8] sm:$0xff]
      %v1114 = vld [vmem:[%s4 + $0x10] sm:$0xff]
      %v1115 = vld [vmem:[%s4 + $0x18] sm:$0xff]
      %v1116 = vld [vmem:[%s4 + $0x20] sm:$0xff]
      %v1117 = vld [vmem:[%s4 + $0x28] sm:$0xff]
      %v1118 = vld [vmem:[%s4 + $0x30] sm:$0xff]
      %v1119 = vld [vmem:[%s4 + $0x38] sm:$0xff]
      %vm1120 = vcmask 523264
      %v1122 = vsel %vm1120, %v1112, 0
      %v1125 = vsel %vm1120, %v1113, 0
      %v1128 = vsel %vm1120, %v1114, 0
      %v1131 = vsel %vm1120, %v1115, 0
      %v1134 = vsel %vm1120, %v1116, 0
      %v1137 = vsel %vm1120, %v1117, 0
      %v1140 = vsel %vm1120, %v1118, 0
      %v1143 = vsel %vm1120, %v1119, 0
      %1145 = vmatprep.subr.mxu0 0.0
      %1146 = vmatpush1.msra.mxu0 %v1104
      %1147 = vmatprep.subr.mxu0 0.0
      %1148 = vmatpush1.msra.mxu0 %v1105
      %1149 = vmatprep.subr.mxu0 0.0
      %1150 = vmatpush1.msra.mxu0 %v1106
      %1151 = vmatprep.subr.mxu0 0.0
      %1152 = vmatpush1.msra.mxu0 %v1107
      %1153 = vmatprep.subr.mxu0 0.0
      %1154 = vmatpush1.msra.mxu0 %v1108
      %1155 = vmatprep.subr.mxu0 0.0
      %1156 = vmatpush1.msra.mxu0 %v1109
      %1157 = vmatprep.subr.mxu0 0.0
      %1158 = vmatpush1.msra.mxu0 %v1110
      %1159 = vmatprep.subr.mxu0 0.0
      %1160 = vmatpush1.msra.mxu0 %v1111
      %1161 = vmatprep.subr.mxu0 0.0
      %1162 = vmatpush1.msra.mxu0 0.0
      %1163 = vmatprep.subr.mxu0 0.0
      %1164 = vmatpush1.msra.mxu0 0.0
      %1165 = vmatprep.subr.mxu0 0.0
      %1166 = vmatpush1.msra.mxu0 0.0
      %1167 = vmatprep.subr.mxu0 0.0
      %1168 = vmatpush1.msra.mxu0 0.0
      %1169 = vmatprep.subr.mxu0 0.0
      %1170 = vmatpush1.msra.mxu0 0.0
      %1171 = vmatprep.subr.mxu0 0.0
      %1172 = vmatpush1.msra.mxu0 0.0
      %1173 = vmatprep.subr.mxu0 0.0
      %1174 = vmatpush1.msra.mxu0 0.0
      %1175 = vmatprep.subr.mxu0 0.0
      %1176 = vmatpush1.msra.mxu0 0.0
      %1177 = vmatprep.subr.mxu0 0.0
      %1178 = vmatpush1.msra.mxu0 0.0
      %1179 = vmatprep.subr.mxu0 0.0
      %1180 = vmatpush1.msra.mxu0 0.0
      %1181 = vmatprep.subr.mxu0 0.0
      %1182 = vmatpush1.msra.mxu0 0.0
      %1183 = vmatprep.subr.mxu0 0.0
      %1184 = vmatpush1.msra.mxu0 0.0
      %1185 = vmatprep.subr.mxu0 0.0
      %1186 = vmatpush1.msra.mxu0 0.0
      %1187 = vmatprep.subr.mxu0 0.0
      %1188 = vmatpush1.msra.mxu0 0.0
      %1189 = vmatprep.subr.mxu0 0.0
      %1190 = vmatpush1.msra.mxu0 0.0
      %1191 = vmatprep.subr.mxu0 0.0
      %1192 = vmatpush1.msra.mxu0 0.0
      %1193 = vmatprep.subr.mxu0 0.0
      %1194 = vmatpush1.msra.mxu0 0.0
      %1195 = vmatprep.subr.mxu0 0.0
      %1196 = vmatpush1.msra.mxu0 0.0
      %1197 = vmatprep.subr.mxu0 0.0
      %1198 = vmatpush1.msra.mxu0 0.0
      %1199 = vmatprep.subr.mxu0 0.0
      %1200 = vmatpush1.msra.mxu0 0.0
      %1201 = vmatprep.subr.mxu0 0.0
      %1202 = vmatpush1.msra.mxu0 0.0
      %1203 = vmatprep.subr.mxu0 0.0
      %1204 = vmatpush1.msra.mxu0 0.0
      %1205 = vmatprep.subr.mxu0 0.0
      %1206 = vmatpush1.msra.mxu0 0.0
      %1207 = vmatprep.subr.mxu0 0.0
      %1208 = vmatpush1.msra.mxu0 0.0
      %1209 = vmatprep.mubr.f32.mxu0 0.0
      %1210 = vmatmul.mubr.f32.gmra.mrb[0].mxu0 %v1122
      %v1211 = vpop.f32.mrb[0].mxu0
      %v1212 = vadd.f32 0.0, %v1211
      %v1213 = vpop.f32.mrb[0].mxu0
      %1214 = vmatprep.mubr.f32.mxu0 0.0
      %1215 = vmatmul.mubr.f32.gmra.mrb[0].mxu0 %v1125
      %v1216 = vpop.f32.mrb[0].mxu0
      %v1217 = vadd.f32 0.0, %v1216
      %v1218 = vpop.f32.mrb[0].mxu0
      %1219 = vmatprep.mubr.f32.mxu0 0.0
      %1220 = vmatmul.mubr.f32.gmra.mrb[0].mxu0 %v1128
      %v1221 = vpop.f32.mrb[0].mxu0
      %v1222 = vadd.f32 0.0, %v1221
      %v1223 = vpop.f32.mrb[0].mxu0
      %1224 = vmatprep.mubr.f32.mxu0 0.0
      %1225 = vmatmul.mubr.f32.gmra.mrb[0].mxu0 %v1131
      %v1226 = vpop.f32.mrb[0].mxu0
      %v1227 = vadd.f32 0.0, %v1226
      %v1228 = vpop.f32.mrb[0].mxu0
      %1229 = vmatprep.mubr.f32.mxu0 0.0
      %1230 = vmatmul.mubr.f32.gmra.mrb[0].mxu0 %v1134
      %v1231 = vpop.f32.mrb[0].mxu0
      %v1232 = vadd.f32 0.0, %v1231
      %v1233 = vpop.f32.mrb[0].mxu0
      %1234 = vmatprep.mubr.f32.mxu0 0.0
      %1235 = vmatmul.mubr.f32.gmra.mrb[0].mxu0 %v1137
      %v1236 = vpop.f32.mrb[0].mxu0
      %v1237 = vadd.f32 0.0, %v1236
      %v1238 = vpop.f32.mrb[0].mxu0
      %1239 = vmatprep.mubr.f32.mxu0 0.0
      %1240 = vmatmul.mubr.f32.gmra.mrb[0].mxu0 %v1140
      %v1241 = vpop.f32.mrb[0].mxu0
      %v1242 = vadd.f32 0.0, %v1241
      %v1243 = vpop.f32.mrb[0].mxu0
      %1244 = vmatprep.mubr.f32.mxu0 0.0
      %1245 = vmatmul.mubr.f32.gmra.mrb[0].mxu0 %v1143
      %v1246 = vpop.f32.mrb[0].mxu0
      %v1247 = vadd.f32 0.0, %v1246
      %v1248 = vpop.f32.mrb[0].mxu0
      %1249 = vdwg.mxu0
      %v1250 = vmax.f32 %v1212, 0.0
      %v1251 = vmax.f32 %v1217, 0.0
      %v1252 = vmax.f32 %v1222, 0.0
      %v1253 = vmax.f32 %v1227, 0.0
      %v1254 = vmax.f32 %v1232, 0.0
      %v1255 = vmax.f32 %v1237, 0.0
      %v1256 = vmax.f32 %v1242, 0.0
      %v1257 = vmax.f32 %v1247, 0.0
      %v1258 = vld [vmem:[%s5] sm:$0xff]
      %v1260 = vsel %vm1120, %v1258, 0
      %1262 = vmatprep.subr.mxu0 0.0
      %1263 = vmatpush1.msra.mxu0 %v1250
      %1264 = vmatprep.subr.mxu0 0.0
      %1265 = vmatpush1.msra.mxu0 %v1251
      %1266 = vmatprep.subr.mxu0 0.0
      %1267 = vmatpush1.msra.mxu0 %v1252
      %1268 = vmatprep.subr.mxu0 0.0
      %1269 = vmatpush1.msra.mxu0 %v1253
      %1270 = vmatprep.subr.mxu0 0.0
      %1271 = vmatpush1.msra.mxu0 %v1254
      %1272 = vmatprep.subr.mxu0 0.0
      %1273 = vmatpush1.msra.mxu0 %v1255
      %1274 = vmatprep.subr.mxu0 0.0
      %1275 = vmatpush1.msra.mxu0 %v1256
      %1276 = vmatprep.subr.mxu0 0.0
      %1277 = vmatpush1.msra.mxu0 %v1257
      %1278 = vmatprep.subr.mxu0 0.0
      %1279 = vmatpush1.msra.mxu0 0.0
      %1280 = vmatprep.subr.mxu0 0.0
      %1281 = vmatpush1.msra.mxu0 0.0
      %1282 = vmatprep.subr.mxu0 0.0
      %1283 = vmatpush1.msra.mxu0 0.0
      %1284 = vmatprep.subr.mxu0 0.0
      %1285 = vmatpush1.msra.mxu0 0.0
      %1286 = vmatprep.subr.mxu0 0.0
      %1287 = vmatpush1.msra.mxu0 0.0
      %1288 = vmatprep.subr.mxu0 0.0
      %1289 = vmatpush1.msra.mxu0 0.0
      %1290 = vmatprep.subr.mxu0 0.0
      %1291 = vmatpush1.msra.mxu0 0.0
      %1292 = vmatprep.subr.mxu0 0.0
      %1293 = vmatpush1.msra.mxu0 0.0
      %1294 = vmatprep.subr.mxu0 0.0
      %1295 = vmatpush1.msra.mxu0 0.0
      %1296 = vmatprep.subr.mxu0 0.0
      %1297 = vmatpush1.msra.mxu0 0.0
      %1298 = vmatprep.subr.mxu0 0.0
      %1299 = vmatpush1.msra.mxu0 0.0
      %1300 = vmatprep.subr.mxu0 0.0
      %1301 = vmatpush1.msra.mxu0 0.0
      %1302 = vmatprep.subr.mxu0 0.0
      %1303 = vmatpush1.msra.mxu0 0.0
      %1304 = vmatprep.subr.mxu0 0.0
      %1305 = vmatpush1.msra.mxu0 0.0
      %1306 = vmatprep.subr.mxu0 0.0
      %1307 = vmatpush1.msra.mxu0 0.0
      %1308 = vmatprep.subr.mxu0 0.0
      %1309 = vmatpush1.msra.mxu0 0.0
      %1310 = vmatprep.subr.mxu0 0.0
      %1311 = vmatpush1.msra.mxu0 0.0
      %1312 = vmatprep.subr.mxu0 0.0
      %1313 = vmatpush1.msra.mxu0 0.0
      %1314 = vmatprep.subr.mxu0 0.0
      %1315 = vmatpush1.msra.mxu0 0.0
      %1316 = vmatprep.subr.mxu0 0.0
      %1317 = vmatpush1.msra.mxu0 0.0
      %1318 = vmatprep.subr.mxu0 0.0
      %1319 = vmatpush1.msra.mxu0 0.0
      %1320 = vmatprep.subr.mxu0 0.0
      %1321 = vmatpush1.msra.mxu0 0.0
      %1322 = vmatprep.subr.mxu0 0.0
      %1323 = vmatpush1.msra.mxu0 0.0
      %1324 = vmatprep.subr.mxu0 0.0
      %1325 = vmatpush1.msra.mxu0 0.0
      %1326 = vmatprep.mubr.f32.mxu0 0.0
      %1327 = vmatmul.mubr.f32.gmra.mrb[0].mxu0 %v1260
      %v1328 = vpop.f32.mrb[0].mxu0
      %v1329 = vadd.f32 0.0, %v1328
      %v1330 = vpop.f32.mrb[0].mxu0
      %1331 = vdwg.mxu0
      %1332 = vst [vmem:[%s244] sm:$0x1] %v1329
      %p1333 = scmp.lt.s32.totalorder %s17, 1
      %s1334 = scalar_select %p1333, %s17, 1
      %s1335 = scalar_lea.vmem %s6, %s1334
      // Predicated region
      $region45: #{radar_occ_nerf_forward.1} parent=43 // pred_check
        %p1336 = pneg %p166
      $region46: #{radar_occ_nerf_forward.1} parent=43 // pred_check_branch
        %1338 = sbr.rel (%p1336) target = $region48
      $region47: #{radar_occ_nerf_forward.1} parent=43 // pred_region
        _
      $region48: #{radar_occ_nerf_forward.1} parent=43 // pred_fallthru
        _
    $region44: #{radar_occ_nerf_forward.1} parent=5 // pred_fallthru
      _
    %p1339 = scmp.le.s32.totalorder 2, %s12
    // Predicated region
    $region49: #{radar_occ_nerf_forward.1} parent=5 // pred_check
      %p1340 = pneg %p1339
    $region50: #{radar_occ_nerf_forward.1} parent=5 // pred_check_branch
      %1342 = sbr.rel (%p1340) target = $region52
    $region51: #{radar_occ_nerf_forward.1} parent=5 // pred_region
      %s1343 = ssub.s32 %s12, 2
      // Predicated region
      $region53: #{radar_occ_nerf_forward.1} parent=51 // pred_check
        %p1344 = pneg %p172
      $region54: #{radar_occ_nerf_forward.1} parent=51 // pred_check_branch
        %1346 = sbr.rel (%p1344) target = $region56
      $region55: #{radar_occ_nerf_forward.1} parent=51 // pred_region
        %p1347 = scmp.lt.s32.totalorder %s18, 1
        %s1348 = scalar_select %p1347, %s18, 1
        %s1349 = scalar_lea.vmem %s6, %s1348
      $region56: #{radar_occ_nerf_forward.1} parent=51 // pred_fallthru
        _
    $region52: #{radar_occ_nerf_forward.1} parent=5 // pred_fallthru
      _
  $region6: #{radar_occ_nerf_forward.1} parent=0 // loop_footer
    %s16 = sadd.s32 1, %s12
  $region7: #{radar_occ_nerf_forward.1} parent=0 // loop_footer_branch
    %11 = sbr.rel target = $region3
  $region8: #{radar_occ_nerf_forward.1} parent=0 // loop_exit
    _

</llo_original>
